<compile_context>
chip_gen: v6e
topology: v6e:2x2x1
jax: 0.10.0
libtpu: 0.0.40
codegen_flags: <defaults>
</compile_context>

<pallas_src>
import jax
import jax.numpy as jnp
from jax import lax
from jax.experimental import pallas as pl
from jax.experimental.pallas import tpu as pltpu

EPS = 1e-5
F0, F1, F2, F3, F4 = 16, 32, 48, 16, 5          # layer widths 16->32->48->16->5
# Augmented (bias-folded) contraction widths, multiples of 16 for clean bf16
# sublane packing: rows [0:F) hold activations, row F holds 1.0, rest hold 0.
A1, A2, A3 = 48, 64, 32


def _jsc_kernel(x_ref, w1_ref, w2_ref, w3_ref, w4_ref, s0t0_ref, t1_ref,
                o_ref, a1_ref, a2_ref, a3_ref):
    tb = x_ref.shape[0]          # outer batch tile (rows of x block)
    tc = a1_ref.shape[1]         # inner chunk (columns processed per pass)
    n_chunks = tb // tc

    # Hoisted per-grid-step parameter loads (all tiny; weights stay resident —
    # constant-index BlockSpecs are not re-DMA'd when the block index repeats).
    s0 = s0t0_ref[0:1, :]                        # (1, F0) f32
    t0 = s0t0_ref[1:2, :]                        # (1, F0) f32
    t1 = t1_ref[...]                             # (F1, 1) f32
    w1 = w1_ref[...]                             # (F1, F0) bf16
    w2 = w2_ref[...]                             # (F2, A1) bf16, bias in col F1
    w3 = w3_ref[...]                             # (F3, A2) bf16, bias in col F2
    w4 = w4_ref[...]                             # (F4, A3) bf16, bias in col F3

    # One-time init of the constant tail rows of each augmented activation
    # buffer: row F = 1.0 (bias row consumed by the folded-bias matmul), the
    # remaining alignment-padding rows = 0.0.
    for ref, f in ((a1_ref, F1), (a2_ref, F2), (a3_ref, F3)):
        rows = lax.broadcasted_iota(jnp.int32, (ref.shape[0] - f, ref.shape[1]), 0)
        ref[f:, :] = jnp.where(rows == 0, 1.0, 0.0).astype(jnp.bfloat16)

    def process(c):
        start = c * tc
        if not isinstance(start, int):
            start = pl.multiple_of(start, tc)
        cols = pl.ds(start, tc)

        # Input BN (eval, folded) + ReLU in batch-major (tc, F0) layout.
        # f32 elementwise math: safe on v5e (no bf16 VALU).
        xc = x_ref[cols, :]                                        # (tc, F0) f32
        xr = jnp.maximum(xc * s0 + t0, 0.0).astype(jnp.bfloat16)   # (tc, F0) bf16

        # Layer 1: contract the shared F0 axis of (F1,F0) x (tc,F0) -> (F1,tc);
        # activations become feature-major (batch in lanes) without a transpose.
        acc1 = lax.dot_general(w1, xr, (((1,), (1,)), ((), ())),
                               preferred_element_type=jnp.float32)
        a1_ref[0:F1, :] = jnp.maximum(acc1 + t1, 0.0).astype(jnp.bfloat16)

        # Layers 2-4: bias folded into the extra weight column; the constant
        # ones-row of the scratch operand supplies the "+ shift" inside the MXU.
        acc2 = jnp.dot(w2, a1_ref[...], preferred_element_type=jnp.float32)
        a2_ref[0:F2, :] = jnp.maximum(acc2, 0.0).astype(jnp.bfloat16)
        # TODO(synk): Dropout(0.5) is identity in eval mode (no masking here).
        acc3 = jnp.dot(w3, a2_ref[...], preferred_element_type=jnp.float32)
        a3_ref[0:F3, :] = jnp.maximum(acc3, 0.0).astype(jnp.bfloat16)

        acc4 = jnp.dot(w4, a3_ref[...], preferred_element_type=jnp.float32)
        o_ref[:, cols] = jnp.maximum(acc4, 0.0).astype(o_ref.dtype)  # (F4, tc)

    if n_chunks == 1:
        process(0)
    else:
        def body(c, carry):
            process(c)
            return carry
        lax.fori_loop(0, n_chunks, body, 0)


def _const_spec(shape):
    # Whole-array block with a constant block index (parameter resident in VMEM).
    return pl.BlockSpec(shape, lambda i: (0,) * len(shape))


def _tiles(B, *, max_tile=32768, chunk=2048):
    """(outer batch tile, inner chunk). Both multiples of 128; tile % chunk == 0.

    Big outer tiles amortize the ~0.35 us/grid-step overhead; the inner chunk
    bounds live intermediates to ~1 MiB. Prefer >= 2 grid steps (v7x megacore).
    """
    if B <= chunk:
        t = max(128, pl.cdiv(B, 128) * 128)
        return t, t
    tile = min(max_tile, max(chunk, pl.cdiv(B, 2 * chunk) * chunk))
    return tile, chunk


def jsc_trt_forward(x, params, *, batch_tile=None, chunk=None,
                    feature_major_output=False):
    """x: (B, 16) float32. Returns (B, 5) float32 (eval-mode forward), or the
    kernel-native lane-dense (5, B) bfloat16 if feature_major_output=True."""
    B, f_in = x.shape
    assert f_in == F0
    d_tb, d_tc = _tiles(B)
    tb = d_tb if batch_tile is None else batch_tile
    tc = d_tc if chunk is None else chunk
    assert tc % 128 == 0 and tb % tc == 0

    x = x.astype(jnp.float32)
    steps = pl.cdiv(B, tb)               # no padding: ragged edge block is masked

    w1, w2, w3, w4 = params["w1"], params["w2a"], params["w3a"], params["w4a"]
    s0t0, t1 = params["s0t0"], params["t1"]

    out = pl.pallas_call(
        _jsc_kernel,
        out_shape=jax.ShapeDtypeStruct((F4, B), jnp.bfloat16),
        grid_spec=pltpu.PrefetchScalarGridSpec(
            num_scalar_prefetch=0,
            grid=(steps,),
            in_specs=[
                pl.BlockSpec((tb, F0), lambda i: (i, 0)),   # x: batch-major f32
                _const_spec(w1.shape), _const_spec(w2.shape),
                _const_spec(w3.shape), _const_spec(w4.shape),
                _const_spec(s0t0.shape), _const_spec(t1.shape),
            ],
            out_specs=pl.BlockSpec((F4, tb), lambda i: (0, i)),
            scratch_shapes=[
                pltpu.VMEM((A1, tc), jnp.bfloat16),   # h1 + ones row (+ zero pad)
                pltpu.VMEM((A2, tc), jnp.bfloat16),   # h2 + ones row (+ zero pad)
                pltpu.VMEM((A3, tc), jnp.bfloat16),   # h3 + ones row (+ zero pad)
            ],
        ),
        compiler_params=pltpu.CompilerParams(
            dimension_semantics=("parallel",)),
    )(x, w1, w2, w3, w4, s0t0, t1)

    if feature_major_output:
        return out                         # (5, B) bf16, lane-dense
    return out.T.astype(jnp.float32)       # (B, 5) f32 (module layout)


def make_params(key):
    """Deterministic synthetic parameters. Eval-mode BN is folded into
    per-feature (scale, shift); scale folded into bf16 feature-major weights;
    for layers 2-4 the shift is folded into an extra weight column (consumed by
    the ones-row of the augmented activation operand inside the kernel)."""
    keys = jax.random.split(key, 32)
    ki = iter(range(32))

    def bn_affine(f):
        gamma = 1.0 + 0.1 * jax.random.normal(keys[next(ki)], (f,), jnp.float32)
        beta = 0.1 * jax.random.normal(keys[next(ki)], (f,), jnp.float32)
        mean = 0.1 * jax.random.normal(keys[next(ki)], (f,), jnp.float32)
        var = jnp.abs(jax.random.normal(keys[next(ki)], (f,), jnp.float32)) + 0.5
        scale = gamma / jnp.sqrt(var + EPS)
        shift = beta - mean * scale
        return scale, shift

    def lin(fin, fout):
        w = jax.random.normal(keys[next(ki)], (fin, fout), jnp.float32) / jnp.sqrt(fin)
        b = 0.05 * jax.random.normal(keys[next(ki)], (fout,), jnp.float32)
        return w, b

    def fold(w, b, scale, shift):
        # (xW + b)*s + t == x (W*s) + (b*s + t)
        wt = scale[:, None] * w.T            # (fout, fin) f32, feature-major
        t = b * scale + shift                # (fout,)
        return wt, t

    def aug(wt, t, a_width):
        fout, fin = wt.shape
        wa = jnp.zeros((fout, a_width), jnp.float32)
        wa = wa.at[:, :fin].set(wt).at[:, fin].set(t)
        return wa.astype(jnp.bfloat16)

    p = {}
    s0, t0 = bn_affine(F0)
    p["s0t0"] = jnp.stack([s0, t0])                       # (2, 16) f32

    w, b = lin(F0, F1); s, sh = bn_affine(F1)
    wt, t = fold(w, b, s, sh)
    p["w1"] = wt.astype(jnp.bfloat16)                     # (32, 16) bf16
    p["t1"] = t[:, None].astype(jnp.float32)              # (32, 1)  f32

    w, b = lin(F1, F2); s, sh = bn_affine(F2)
    p["w2a"] = aug(*fold(w, b, s, sh), A1)                # (48, 48) bf16
    w, b = lin(F2, F3); s, sh = bn_affine(F3)
    p["w3a"] = aug(*fold(w, b, s, sh), A2)                # (16, 64) bf16
    w, b = lin(F3, F4); s, sh = bn_affine(F4)
    p["w4a"] = aug(*fold(w, b, s, sh), A3)                # (5, 32)  bf16
    return p


def jsc_trt_reference(x, params):
    """Pure-JAX mirror of the kernel numerics: bf16 matmul operands / folded
    bias columns, f32 accumulation, bf16 rounding between layers and at the
    output (so the comparison tolerance can stay tight)."""
    hi = jax.lax.Precision.HIGHEST

    def rnd(h):
        return h.astype(jnp.bfloat16).astype(jnp.float32)

    s0 = params["s0t0"][0][None, :]
    t0 = params["s0t0"][1][None, :]
    h = rnd(jnp.maximum(x.astype(jnp.float32) * s0 + t0, 0.0))

    w1 = params["w1"].astype(jnp.float32)
    t1 = params["t1"].astype(jnp.float32)[:, 0]
    h = rnd(jnp.maximum(jnp.matmul(h, w1.T, precision=hi) + t1[None, :], 0.0))

    for name, fin in (("w2a", F1), ("w3a", F2), ("w4a", F3)):
        wa = params[name].astype(jnp.float32)
        h = rnd(jnp.maximum(jnp.matmul(h, wa[:, :fin].T, precision=hi)
                            + wa[:, fin][None, :], 0.0))
    return h


if __name__ == "__main__":
    key = jax.random.PRNGKey(0)
    kx, kp = jax.random.split(key)

    B = 256
    x = jax.random.normal(kx, (B, F0), jnp.float32)
    params = make_params(kp)

    out = jax.block_until_ready(jsc_trt_forward(x, params))
    ref = jsc_trt_reference(x, params)

    assert out.shape == (B, F4)
    assert jnp.allclose(out, ref, atol=2e-2, rtol=2e-2), "mismatch vs JAX reference"
    print("KERNEL_OK")
</pallas_src>

<mosaic_0001>
module attributes {stable_mosaic.version = 11 : i64} {
  func.func @_jsc_kernel(%arg0: i32, %arg1: memref<256x16xf32, #tpu.memory_space<vmem>>, %arg2: memref<32x16xbf16, #tpu.memory_space<vmem>>, %arg3: memref<48x48xbf16, #tpu.memory_space<vmem>>, %arg4: memref<16x64xbf16, #tpu.memory_space<vmem>>, %arg5: memref<5x32xbf16, #tpu.memory_space<vmem>>, %arg6: memref<2x16xf32, #tpu.memory_space<vmem>>, %arg7: memref<32x1xf32, #tpu.memory_space<vmem>>, %arg8: memref<5x256xbf16, #tpu.memory_space<vmem>>, %arg9: memref<48x256xbf16, #tpu.memory_space<vmem>>, %arg10: memref<64x256xbf16, #tpu.memory_space<vmem>>, %arg11: memref<32x256xbf16, #tpu.memory_space<vmem>>) attributes {dimension_semantics = [#tpu.dimension_semantics<parallel>], iteration_bounds = array<i64: 1>, scalar_prefetch = 0 : i64, scratch_operands = 3 : i64, tpu.core_type = #tpu.core_type<tc>, window_params = [{transform_indices = @transform_0, window_bounds = array<i64: 256, 16>}, {pipeline_mode = #tpu.pipeline_mode<synchronous>, transform_indices = @transform_1, window_bounds = array<i64: 32, 16>}, {pipeline_mode = #tpu.pipeline_mode<synchronous>, transform_indices = @transform_2, window_bounds = array<i64: 48, 48>}, {pipeline_mode = #tpu.pipeline_mode<synchronous>, transform_indices = @transform_3, window_bounds = array<i64: 16, 64>}, {pipeline_mode = #tpu.pipeline_mode<synchronous>, transform_indices = @transform_4, window_bounds = array<i64: 5, 32>}, {pipeline_mode = #tpu.pipeline_mode<synchronous>, transform_indices = @transform_5, window_bounds = array<i64: 2, 16>}, {pipeline_mode = #tpu.pipeline_mode<synchronous>, transform_indices = @transform_6, window_bounds = array<i64: 32, 1>}, {transform_indices = @transform_7, window_bounds = array<i64: 5, 256>}]} {
    %c0 = arith.constant 0 : index
    %c0_0 = arith.constant 0 : index
    %0 = vector.load %arg6[%c0, %c0_0] : memref<2x16xf32, #tpu.memory_space<vmem>>, vector<1x16xf32>
    %c1 = arith.constant 1 : index
    %c0_1 = arith.constant 0 : index
    %1 = vector.load %arg6[%c1, %c0_1] : memref<2x16xf32, #tpu.memory_space<vmem>>, vector<1x16xf32>
    %c0_2 = arith.constant 0 : index
    %c0_3 = arith.constant 0 : index
    %2 = vector.load %arg7[%c0_2, %c0_3] : memref<32x1xf32, #tpu.memory_space<vmem>>, vector<32x1xf32>
    %c0_4 = arith.constant 0 : index
    %c0_5 = arith.constant 0 : index
    %3 = vector.load %arg2[%c0_4, %c0_5] : memref<32x16xbf16, #tpu.memory_space<vmem>>, vector<32x16xbf16>
    %c0_6 = arith.constant 0 : index
    %c0_7 = arith.constant 0 : index
    %4 = vector.load %arg3[%c0_6, %c0_7] : memref<48x48xbf16, #tpu.memory_space<vmem>>, vector<48x48xbf16>
    %c0_8 = arith.constant 0 : index
    %c0_9 = arith.constant 0 : index
    %5 = vector.load %arg4[%c0_8, %c0_9] : memref<16x64xbf16, #tpu.memory_space<vmem>>, vector<16x64xbf16>
    %c0_10 = arith.constant 0 : index
    %c0_11 = arith.constant 0 : index
    %6 = vector.load %arg5[%c0_10, %c0_11] : memref<5x32xbf16, #tpu.memory_space<vmem>>, vector<5x32xbf16>
    %7 = tpu.iota {dimensions = array<i32: 0>} : vector<16x256xi32>
    %c0_i32 = arith.constant 0 : i32
    %8 = vector.broadcast %c0_i32 : i32 to vector<16x256xi32>
    %9 = arith.cmpi eq, %7, %8 : vector<16x256xi32>
    %cst = arith.constant 1.000000e+00 : f32
    %cst_12 = arith.constant 0.000000e+00 : f32
    %10 = vector.broadcast %cst : f32 to vector<16x256xf32>
    %11 = vector.broadcast %cst_12 : f32 to vector<16x256xf32>
    %12 = arith.select %9, %10, %11 : vector<16x256xi1>, vector<16x256xf32>
    %13 = arith.truncf %12 : vector<16x256xf32> to vector<16x256xbf16>
    %c32 = arith.constant 32 : index
    %c0_13 = arith.constant 0 : index
    %14 = vector.load %arg9[%c32, %c0_13] : memref<48x256xbf16, #tpu.memory_space<vmem>>, vector<16x256xbf16>
    tpu.vector_store %arg9[%c32, %c0_13], %13 {strides = array<i32>} : memref<48x256xbf16, #tpu.memory_space<vmem>>, vector<16x256xbf16>,
    %15 = tpu.iota {dimensions = array<i32: 0>} : vector<16x256xi32>
    %c0_i32_14 = arith.constant 0 : i32
    %16 = vector.broadcast %c0_i32_14 : i32 to vector<16x256xi32>
    %17 = arith.cmpi eq, %15, %16 : vector<16x256xi32>
    %cst_15 = arith.constant 1.000000e+00 : f32
    %cst_16 = arith.constant 0.000000e+00 : f32
    %18 = vector.broadcast %cst_15 : f32 to vector<16x256xf32>
    %19 = vector.broadcast %cst_16 : f32 to vector<16x256xf32>
    %20 = arith.select %17, %18, %19 : vector<16x256xi1>, vector<16x256xf32>
    %21 = arith.truncf %20 : vector<16x256xf32> to vector<16x256xbf16>
    %c48 = arith.constant 48 : index
    %c0_17 = arith.constant 0 : index
    %22 = vector.load %arg10[%c48, %c0_17] : memref<64x256xbf16, #tpu.memory_space<vmem>>, vector<16x256xbf16>
    tpu.vector_store %arg10[%c48, %c0_17], %21 {strides = array<i32>} : memref<64x256xbf16, #tpu.memory_space<vmem>>, vector<16x256xbf16>,
    %23 = tpu.iota {dimensions = array<i32: 0>} : vector<16x256xi32>
    %c0_i32_18 = arith.constant 0 : i32
    %24 = vector.broadcast %c0_i32_18 : i32 to vector<16x256xi32>
    %25 = arith.cmpi eq, %23, %24 : vector<16x256xi32>
    %cst_19 = arith.constant 1.000000e+00 : f32
    %cst_20 = arith.constant 0.000000e+00 : f32
    %26 = vector.broadcast %cst_19 : f32 to vector<16x256xf32>
    %27 = vector.broadcast %cst_20 : f32 to vector<16x256xf32>
    %28 = arith.select %25, %26, %27 : vector<16x256xi1>, vector<16x256xf32>
    %29 = arith.truncf %28 : vector<16x256xf32> to vector<16x256xbf16>
    %c16 = arith.constant 16 : index
    %c0_21 = arith.constant 0 : index
    %30 = vector.load %arg11[%c16, %c0_21] : memref<32x256xbf16, #tpu.memory_space<vmem>>, vector<16x256xbf16>
    tpu.vector_store %arg11[%c16, %c0_21], %29 {strides = array<i32>} : memref<32x256xbf16, #tpu.memory_space<vmem>>, vector<16x256xbf16>,
    %c0_22 = arith.constant 0 : index
    %c0_23 = arith.constant 0 : index
    %31 = vector.load %arg1[%c0_22, %c0_23] : memref<256x16xf32, #tpu.memory_space<vmem>>, vector<256x16xf32>
    %32 = vector.broadcast %0 : vector<1x16xf32> to vector<256x16xf32>
    %33 = arith.mulf %31, %32 : vector<256x16xf32>
    %34 = vector.broadcast %1 : vector<1x16xf32> to vector<256x16xf32>
    %35 = arith.addf %33, %34 : vector<256x16xf32>
    %cst_24 = arith.constant 0.000000e+00 : f32
    %36 = vector.broadcast %cst_24 : f32 to vector<256x16xf32>
    %37 = arith.maximumf %35, %36 : vector<256x16xf32>
    %38 = arith.truncf %37 : vector<256x16xf32> to vector<256x16xbf16>
    %cst_25 = arith.constant dense<0.000000e+00> : vector<32x256xf32>
    %39 = tpu.matmul %3, %38, %cst_25 {dimension_numbers = #tpu.dot_dimension_numbers<[1], [1], [0], [0], [0, 0, 1, 0], [], []>} : vector<32x16xbf16>, vector<256x16xbf16>, vector<32x256xf32> -> vector<32x256xf32>
    %40 = vector.broadcast %2 : vector<32x1xf32> to vector<32x256xf32>
    %41 = arith.addf %39, %40 : vector<32x256xf32>
    %cst_26 = arith.constant 0.000000e+00 : f32
    %42 = vector.broadcast %cst_26 : f32 to vector<32x256xf32>
    %43 = arith.maximumf %41, %42 : vector<32x256xf32>
    %44 = arith.truncf %43 : vector<32x256xf32> to vector<32x256xbf16>
    %c0_27 = arith.constant 0 : index
    %c0_28 = arith.constant 0 : index
    %45 = vector.load %arg9[%c0_27, %c0_28] : memref<48x256xbf16, #tpu.memory_space<vmem>>, vector<32x256xbf16>
    tpu.vector_store %arg9[%c0_27, %c0_28], %44 {strides = array<i32>} : memref<48x256xbf16, #tpu.memory_space<vmem>>, vector<32x256xbf16>,
    %c0_29 = arith.constant 0 : index
    %c0_30 = arith.constant 0 : index
    %46 = vector.load %arg9[%c0_29, %c0_30] : memref<48x256xbf16, #tpu.memory_space<vmem>>, vector<48x256xbf16>
    %cst_31 = arith.constant dense<0.000000e+00> : vector<48x256xf32>
    %47 = tpu.matmul %4, %46, %cst_31 {dimension_numbers = #tpu.dot_dimension_numbers<[1], [0], [0], [1], [0, 0, 1, 1], [], []>} : vector<48x48xbf16>, vector<48x256xbf16>, vector<48x256xf32> -> vector<48x256xf32>
    %cst_32 = arith.constant 0.000000e+00 : f32
    %48 = vector.broadcast %cst_32 : f32 to vector<48x256xf32>
    %49 = arith.maximumf %47, %48 : vector<48x256xf32>
    %50 = arith.truncf %49 : vector<48x256xf32> to vector<48x256xbf16>
    %c0_33 = arith.constant 0 : index
    %c0_34 = arith.constant 0 : index
    %51 = vector.load %arg10[%c0_33, %c0_34] : memref<64x256xbf16, #tpu.memory_space<vmem>>, vector<48x256xbf16>
    tpu.vector_store %arg10[%c0_33, %c0_34], %50 {strides = array<i32>} : memref<64x256xbf16, #tpu.memory_space<vmem>>, vector<48x256xbf16>,
    %c0_35 = arith.constant 0 : index
    %c0_36 = arith.constant 0 : index
    %52 = vector.load %arg10[%c0_35, %c0_36] : memref<64x256xbf16, #tpu.memory_space<vmem>>, vector<64x256xbf16>
    %cst_37 = arith.constant dense<0.000000e+00> : vector<16x256xf32>
    %53 = tpu.matmul %5, %52, %cst_37 {dimension_numbers = #tpu.dot_dimension_numbers<[1], [0], [0], [1], [0, 0, 1, 1], [], []>} : vector<16x64xbf16>, vector<64x256xbf16>, vector<16x256xf32> -> vector<16x256xf32>
    %cst_38 = arith.constant 0.000000e+00 : f32
    %54 = vector.broadcast %cst_38 : f32 to vector<16x256xf32>
    %55 = arith.maximumf %53, %54 : vector<16x256xf32>
    %56 = arith.truncf %55 : vector<16x256xf32> to vector<16x256xbf16>
    %c0_39 = arith.constant 0 : index
    %c0_40 = arith.constant 0 : index
    %57 = vector.load %arg11[%c0_39, %c0_40] : memref<32x256xbf16, #tpu.memory_space<vmem>>, vector<16x256xbf16>
    tpu.vector_store %arg11[%c0_39, %c0_40], %56 {strides = array<i32>} : memref<32x256xbf16, #tpu.memory_space<vmem>>, vector<16x256xbf16>,
    %c0_41 = arith.constant 0 : index
    %c0_42 = arith.constant 0 : index
    %58 = vector.load %arg11[%c0_41, %c0_42] : memref<32x256xbf16, #tpu.memory_space<vmem>>, vector<32x256xbf16>
    %cst_43 = arith.constant dense<0.000000e+00> : vector<5x256xf32>
    %59 = tpu.matmul %6, %58, %cst_43 {dimension_numbers = #tpu.dot_dimension_numbers<[1], [0], [0], [1], [0, 0, 1, 1], [], []>} : vector<5x32xbf16>, vector<32x256xbf16>, vector<5x256xf32> -> vector<5x256xf32>
    %cst_44 = arith.constant 0.000000e+00 : f32
    %60 = vector.broadcast %cst_44 : f32 to vector<5x256xf32>
    %61 = arith.maximumf %59, %60 : vector<5x256xf32>
    %62 = arith.truncf %61 : vector<5x256xf32> to vector<5x256xbf16>
    %c0_45 = arith.constant 0 : index
    %c0_46 = arith.constant 0 : index
    %63 = vector.load %arg8[%c0_45, %c0_46] : memref<5x256xbf16, #tpu.memory_space<vmem>>, vector<5x256xbf16>
    tpu.vector_store %arg8[%c0_45, %c0_46], %62 {strides = array<i32>} : memref<5x256xbf16, #tpu.memory_space<vmem>>, vector<5x256xbf16>,
    return
  }
  func.func @transform_0(%arg0: i32) -> (i32, i32) {
    %c0_i32 = arith.constant 0 : i32
    %c0_i32_0 = arith.constant 0 : i32
    return %arg0, %c0_i32 : i32, i32
  }
  func.func @transform_1(%arg0: i32) -> (i32, i32) {
    %c0_i32 = arith.constant 0 : i32
    %c0_i32_0 = arith.constant 0 : i32
    %c0_i32_1 = arith.constant 0 : i32
    return %c0_i32, %c0_i32_0 : i32, i32
  }
  func.func @transform_2(%arg0: i32) -> (i32, i32) {
    %c0_i32 = arith.constant 0 : i32
    %c0_i32_0 = arith.constant 0 : i32
    %c0_i32_1 = arith.constant 0 : i32
    return %c0_i32, %c0_i32_0 : i32, i32
  }
  func.func @transform_3(%arg0: i32) -> (i32, i32) {
    %c0_i32 = arith.constant 0 : i32
    %c0_i32_0 = arith.constant 0 : i32
    %c0_i32_1 = arith.constant 0 : i32
    return %c0_i32, %c0_i32_0 : i32, i32
  }
  func.func @transform_4(%arg0: i32) -> (i32, i32) {
    %c0_i32 = arith.constant 0 : i32
    %c0_i32_0 = arith.constant 0 : i32
    %c0_i32_1 = arith.constant 0 : i32
    return %c0_i32, %c0_i32_0 : i32, i32
  }
  func.func @transform_5(%arg0: i32) -> (i32, i32) {
    %c0_i32 = arith.constant 0 : i32
    %c0_i32_0 = arith.constant 0 : i32
    %c0_i32_1 = arith.constant 0 : i32
    return %c0_i32, %c0_i32_0 : i32, i32
  }
  func.func @transform_6(%arg0: i32) -> (i32, i32) {
    %c0_i32 = arith.constant 0 : i32
    %c0_i32_0 = arith.constant 0 : i32
    %c0_i32_1 = arith.constant 0 : i32
    return %c0_i32, %c0_i32_0 : i32, i32
  }
  func.func @transform_7(%arg0: i32) -> (i32, i32) {
    %c0_i32 = arith.constant 0 : i32
    %c0_i32_0 = arith.constant 0 : i32
    return %c0_i32, %arg0 : i32, i32
  }
}

</mosaic_0001>

<llo_original>
// kernel: tpu_custom_call.1
$region0: #{tpu_custom_call.1}
  #allocation0 [shape = 'u32[]', space=smem, size = 0x4, offset = 0x4, fixed_abs, tag = 'smem constant byte address 0x4 - core index']
  #allocation1 [shape = 'u32[144,128]{1,0:T(1,128)}', space=vmem, size = 0x12000, scoped, tag = 'internal scratch']
  #allocation2 [shape = 'bf16[48,256]{1,0:T(8,128)(2,1)}', space=vmem, size = 0x6000, scoped, tag = 'scratch operand']
  #allocation3 [shape = 'bf16[64,256]{1,0:T(8,128)(2,1)}', space=vmem, size = 0x8000, scoped, tag = 'scratch operand']
  #allocation4 [shape = 'bf16[32,256]{1,0:T(8,128)(2,1)}', space=vmem, size = 0x4000, scoped, tag = 'scratch operand']
  %s0 = inlined_call_operand.vmem [shape: f32[256,16], index: 0, kind: input, shape index: {}]
  %s1 = inlined_call_operand.vmem [shape: bf16[32,16], index: 1, kind: input, shape index: {}]
  %s2 = inlined_call_operand.vmem [shape: bf16[48,48], index: 2, kind: input, shape index: {}]
  %s3 = inlined_call_operand.vmem [shape: bf16[16,64], index: 3, kind: input, shape index: {}]
  %s4 = inlined_call_operand.vmem [shape: bf16[5,32], index: 4, kind: input, shape index: {}]
  %s5 = inlined_call_operand.vmem [shape: f32[2,16], index: 5, kind: input, shape index: {}]
  %s6 = inlined_call_operand.vmem [shape: f32[32,1], index: 6, kind: input, shape index: {}]
  %s7 = inlined_call_operand.hbm [shape: bf16[5,256], index: 7, kind: output, shape index: {}]
  %s8 = sld [smem:[#allocation0]]
  $region38: #{tpu_custom_call.1} parent=0
    _
  %s10 = ssub.s32 1, %s8
  %s11 = scalar_select 0, %s10, %s8
  $region1: #{tpu_custom_call.1} parent=0
    #allocation5 [shape = 'u8[4096]{0}', space=vmem, size = 0x1000, scoped, tag = 'output window, operand 0, single buffered']
    #allocation6 [shape = 's32[1]{0}', space=sflag, size = 0x4, scoped, tag = 'scoped memory for tpu_custom_call.1']
    %12 = vsyncpa [#allocation6], 0
    // Predicated region
    $region2: #{tpu_custom_call.1} parent=1 // pred_check
      _
    $region3: #{tpu_custom_call.1} parent=1 // pred_check_branch
      %14 = sbr.rel (0) target = $region5
    $region4: #{tpu_custom_call.1} parent=1 // pred_region
      _
    $region5: #{tpu_custom_call.1} parent=1 // pred_fallthru
      _
    // Predicated region
    $region6: #{tpu_custom_call.1} parent=1 // pred_check
      _
    $region7: #{tpu_custom_call.1} parent=1 // pred_check_branch
      %16 = sbr.rel (0) target = $region9
    $region8: #{tpu_custom_call.1} parent=1 // pred_region
      _
    $region9: #{tpu_custom_call.1} parent=1 // pred_fallthru
      _
    // Predicated region
    $region10: #{tpu_custom_call.1} parent=1 // pred_check
      _
    $region11: #{tpu_custom_call.1} parent=1 // pred_check_branch
      %18 = sbr.rel (0) target = $region13
    $region12: #{tpu_custom_call.1} parent=1 // pred_region
      _
    $region13: #{tpu_custom_call.1} parent=1 // pred_fallthru
      _
    // Predicated region
    $region14: #{tpu_custom_call.1} parent=1 // pred_check
      _
    $region15: #{tpu_custom_call.1} parent=1 // pred_check_branch
      %20 = sbr.rel (0) target = $region17
    $region16: #{tpu_custom_call.1} parent=1 // pred_region
      _
    $region17: #{tpu_custom_call.1} parent=1 // pred_fallthru
      _
    // Predicated region
    $region18: #{tpu_custom_call.1} parent=1 // pred_check
      _
    $region19: #{tpu_custom_call.1} parent=1 // pred_check_branch
      %22 = sbr.rel (0) target = $region21
    $region20: #{tpu_custom_call.1} parent=1 // pred_region
      _
    $region21: #{tpu_custom_call.1} parent=1 // pred_fallthru
      _
    // Predicated region
    $region22: #{tpu_custom_call.1} parent=1 // pred_check
      _
    $region23: #{tpu_custom_call.1} parent=1 // pred_check_branch
      %24 = sbr.rel (0) target = $region25
    $region24: #{tpu_custom_call.1} parent=1 // pred_region
      _
    $region25: #{tpu_custom_call.1} parent=1 // pred_fallthru
      _
    // Predicated region
    $region26: #{tpu_custom_call.1} parent=1 // pred_check
      _
    $region27: #{tpu_custom_call.1} parent=1 // pred_check_branch
      %26 = sbr.rel (0) target = $region29
    $region28: #{tpu_custom_call.1} parent=1 // pred_region
      _
    $region29: #{tpu_custom_call.1} parent=1 // pred_fallthru
      _
    %v28 = vld [vmem:[%s5] sm:$0x1]
    %v29 = vld [vmem:[%s5 + $0x1] sm:$0x1]
    %v30 = vld [vmem:[%s6] sm:$0xff]
    %v31 = vld [vmem:[%s6 + $0x8] sm:$0xff]
    %v32 = vld [vmem:[%s6 + $0x10] sm:$0xff]
    %v33 = vld [vmem:[%s6 + $0x18] sm:$0xff]
    %v34 = vld [vmem:[%s1] sm:$0xf]
    %v35 = vld [vmem:[%s1 + $0x4] sm:$0xf]
    %v36 = vld [vmem:[%s1 + $0x8] sm:$0xf]
    %v37 = vld [vmem:[%s1 + $0xc] sm:$0xf]
    %v38 = vld [vmem:[%s2] sm:$0xf]
    %v39 = vld [vmem:[%s2 + $0x4] sm:$0xf]
    %v40 = vld [vmem:[%s2 + $0x8] sm:$0xf]
    %v41 = vld [vmem:[%s2 + $0xc] sm:$0xf]
    %v42 = vld [vmem:[%s2 + $0x10] sm:$0xf]
    %v43 = vld [vmem:[%s2 + $0x14] sm:$0xf]
    %v44 = vld [vmem:[%s3] sm:$0xf]
    %v45 = vld [vmem:[%s3 + $0x4] sm:$0xf]
    %v46 = vld [vmem:[%s4] sm:$0x7]
    %v47 = vlaneseq
    %v48 = vshrl.u32 %v47, 7
    %v49 = vadd.s32 %v48, 8
    %vm50 = vcmp.eq.s32.totalorder %v48, 0
    %vm51 = vcmp.eq.s32.totalorder %v49, 0
    %v52 = vsel %vm50, 1.0, 0.0
    %v53 = vsel %vm51, 1.0, 0.0
    %v54 = vpack.c.bf16 %v53, %v52
    %v57 = vunpack.c.l.s4 839922192
    %v58 = vunpack.c.0.s8 %v57
    %v59 = vlaneseq
    %v60 = vshrl.u32 %v59, 7
    %v61 = vsub.s32 %v58, %v60
    %v62 = vrot.slane %v54, %v61
    %v64 = vunpack.c.l.s4 1985246804
    %v65 = vunpack.c.0.s8 %v64
    %v66 = vlaneseq
    %v67 = vshrl.u32 %v66, 7
    %v68 = vsub.s32 %v65, %v67
    %v69 = vrot.slane %v54, %v68
    %72 = vst [vmem:[#allocation2 + $0x20] sm:$0xff] %v62
    %73 = vst [vmem:[#allocation2 + $0x28] sm:$0xff] %v69
    %74 = vst [vmem:[#allocation3 + $0x30] sm:$0xff] %v62
    %75 = vst [vmem:[#allocation3 + $0x38] sm:$0xff] %v69
    %76 = vst [vmem:[#allocation4 + $0x10] sm:$0xff] %v62
    %77 = vst [vmem:[#allocation4 + $0x18] sm:$0xff] %v69
    %v78 = vld [vmem:[%s0] sm:$0xff]
    %v79 = vld [vmem:[%s0 + $0x8] sm:$0xff]
    %v80 = vld [vmem:[%s0 + $0x10] sm:$0xff]
    %v81 = vld [vmem:[%s0 + $0x18] sm:$0xff]
    %v82 = vld [vmem:[%s0 + $0x20] sm:$0xff]
    %v83 = vld [vmem:[%s0 + $0x28] sm:$0xff]
    %v84 = vld [vmem:[%s0 + $0x30] sm:$0xff]
    %v85 = vld [vmem:[%s0 + $0x38] sm:$0xff]
    %v86 = vld [vmem:[%s0 + $0x40] sm:$0xff]
    %v87 = vld [vmem:[%s0 + $0x48] sm:$0xff]
    %v88 = vld [vmem:[%s0 + $0x50] sm:$0xff]
    %v89 = vld [vmem:[%s0 + $0x58] sm:$0xff]
    %v90 = vld [vmem:[%s0 + $0x60] sm:$0xff]
    %v91 = vld [vmem:[%s0 + $0x68] sm:$0xff]
    %v92 = vld [vmem:[%s0 + $0x70] sm:$0xff]
    %v93 = vld [vmem:[%s0 + $0x78] sm:$0xff]
    %v94 = vld [vmem:[%s0 + $0x80] sm:$0xff]
    %v95 = vld [vmem:[%s0 + $0x88] sm:$0xff]
    %v96 = vld [vmem:[%s0 + $0x90] sm:$0xff]
    %v97 = vld [vmem:[%s0 + $0x98] sm:$0xff]
    %v98 = vld [vmem:[%s0 + $0xa0] sm:$0xff]
    %v99 = vld [vmem:[%s0 + $0xa8] sm:$0xff]
    %v100 = vld [vmem:[%s0 + $0xb0] sm:$0xff]
    %v101 = vld [vmem:[%s0 + $0xb8] sm:$0xff]
    %v102 = vld [vmem:[%s0 + $0xc0] sm:$0xff]
    %v103 = vld [vmem:[%s0 + $0xc8] sm:$0xff]
    %v104 = vld [vmem:[%s0 + $0xd0] sm:$0xff]
    %v105 = vld [vmem:[%s0 + $0xd8] sm:$0xff]
    %v106 = vld [vmem:[%s0 + $0xe0] sm:$0xff]
    %v107 = vld [vmem:[%s0 + $0xe8] sm:$0xff]
    %v108 = vld [vmem:[%s0 + $0xf0] sm:$0xff]
    %v109 = vld [vmem:[%s0 + $0xf8] sm:$0xff]
    %v110 = vlaneseq
    %v111 = vshrl.u32 %v110, 7
    %v112 = vsub.s32 0, %v111
    %v113 = vrot.slane %v28, %v112
    %v114 = vmul.f32 %v78, %v113
    %v115 = vmul.f32 %v79, %v113
    %v116 = vmul.f32 %v80, %v113
    %v117 = vmul.f32 %v81, %v113
    %v118 = vmul.f32 %v82, %v113
    %v119 = vmul.f32 %v83, %v113
    %v120 = vmul.f32 %v84, %v113
    %v121 = vmul.f32 %v85, %v113
    %v122 = vmul.f32 %v86, %v113
    %v123 = vmul.f32 %v87, %v113
    %v124 = vmul.f32 %v88, %v113
    %v125 = vmul.f32 %v89, %v113
    %v126 = vmul.f32 %v90, %v113
    %v127 = vmul.f32 %v91, %v113
    %v128 = vmul.f32 %v92, %v113
    %v129 = vmul.f32 %v93, %v113
    %v130 = vmul.f32 %v94, %v113
    %v131 = vmul.f32 %v95, %v113
    %v132 = vmul.f32 %v96, %v113
    %v133 = vmul.f32 %v97, %v113
    %v134 = vmul.f32 %v98, %v113
    %v135 = vmul.f32 %v99, %v113
    %v136 = vmul.f32 %v100, %v113
    %v137 = vmul.f32 %v101, %v113
    %v138 = vmul.f32 %v102, %v113
    %v139 = vmul.f32 %v103, %v113
    %v140 = vmul.f32 %v104, %v113
    %v141 = vmul.f32 %v105, %v113
    %v142 = vmul.f32 %v106, %v113
    %v143 = vmul.f32 %v107, %v113
    %v144 = vmul.f32 %v108, %v113
    %v145 = vmul.f32 %v109, %v113
    %v146 = vlaneseq
    %v147 = vshrl.u32 %v146, 7
    %v148 = vsub.s32 0, %v147
    %v149 = vrot.slane %v29, %v148
    %v150 = vadd.f32 %v114, %v149
    %v151 = vadd.f32 %v115, %v149
    %v152 = vadd.f32 %v116, %v149
    %v153 = vadd.f32 %v117, %v149
    %v154 = vadd.f32 %v118, %v149
    %v155 = vadd.f32 %v119, %v149
    %v156 = vadd.f32 %v120, %v149
    %v157 = vadd.f32 %v121, %v149
    %v158 = vadd.f32 %v122, %v149
    %v159 = vadd.f32 %v123, %v149
    %v160 = vadd.f32 %v124, %v149
    %v161 = vadd.f32 %v125, %v149
    %v162 = vadd.f32 %v126, %v149
    %v163 = vadd.f32 %v127, %v149
    %v164 = vadd.f32 %v128, %v149
    %v165 = vadd.f32 %v129, %v149
    %v166 = vadd.f32 %v130, %v149
    %v167 = vadd.f32 %v131, %v149
    %v168 = vadd.f32 %v132, %v149
    %v169 = vadd.f32 %v133, %v149
    %v170 = vadd.f32 %v134, %v149
    %v171 = vadd.f32 %v135, %v149
    %v172 = vadd.f32 %v136, %v149
    %v173 = vadd.f32 %v137, %v149
    %v174 = vadd.f32 %v138, %v149
    %v175 = vadd.f32 %v139, %v149
    %v176 = vadd.f32 %v140, %v149
    %v177 = vadd.f32 %v141, %v149
    %v178 = vadd.f32 %v142, %v149
    %v179 = vadd.f32 %v143, %v149
    %v180 = vadd.f32 %v144, %v149
    %v181 = vadd.f32 %v145, %v149
    %v182 = vmax.f32 %v150, 0.0
    %v183 = vmax.f32 %v151, 0.0
    %v184 = vmax.f32 %v152, 0.0
    %v185 = vmax.f32 %v153, 0.0
    %v186 = vmax.f32 %v154, 0.0
    %v187 = vmax.f32 %v155, 0.0
    %v188 = vmax.f32 %v156, 0.0
    %v189 = vmax.f32 %v157, 0.0
    %v190 = vmax.f32 %v158, 0.0
    %v191 = vmax.f32 %v159, 0.0
    %v192 = vmax.f32 %v160, 0.0
    %v193 = vmax.f32 %v161, 0.0
    %v194 = vmax.f32 %v162, 0.0
    %v195 = vmax.f32 %v163, 0.0
    %v196 = vmax.f32 %v164, 0.0
    %v197 = vmax.f32 %v165, 0.0
    %v198 = vmax.f32 %v166, 0.0
    %v199 = vmax.f32 %v167, 0.0
    %v200 = vmax.f32 %v168, 0.0
    %v201 = vmax.f32 %v169, 0.0
    %v202 = vmax.f32 %v170, 0.0
    %v203 = vmax.f32 %v171, 0.0
    %v204 = vmax.f32 %v172, 0.0
    %v205 = vmax.f32 %v173, 0.0
    %v206 = vmax.f32 %v174, 0.0
    %v207 = vmax.f32 %v175, 0.0
    %v208 = vmax.f32 %v176, 0.0
    %v209 = vmax.f32 %v177, 0.0
    %v210 = vmax.f32 %v178, 0.0
    %v211 = vmax.f32 %v179, 0.0
    %v212 = vmax.f32 %v180, 0.0
    %v213 = vmax.f32 %v181, 0.0
    %v214 = vpack.c.bf16 %v183, %v182
    %v215 = vpack.c.bf16 %v185, %v184
    %v216 = vpack.c.bf16 %v187, %v186
    %v217 = vpack.c.bf16 %v189, %v188
    %v218 = vpack.c.bf16 %v191, %v190
    %v219 = vpack.c.bf16 %v193, %v192
    %v220 = vpack.c.bf16 %v195, %v194
    %v221 = vpack.c.bf16 %v197, %v196
    %v222 = vpack.c.bf16 %v199, %v198
    %v223 = vpack.c.bf16 %v201, %v200
    %v224 = vpack.c.bf16 %v203, %v202
    %v225 = vpack.c.bf16 %v205, %v204
    %v226 = vpack.c.bf16 %v207, %v206
    %v227 = vpack.c.bf16 %v209, %v208
    %v228 = vpack.c.bf16 %v211, %v210
    %v229 = vpack.c.bf16 %v213, %v212
    %231 = vset.pattern.permute.xlu0 0
    %232 = vperm.xlu0 %231, %v30
    %v233 = vpop.permute.xlu0 %232
    %236 = vset.pattern.permute.xlu0 0
    %237 = vperm.xlu0 %236, %v31
    %v238 = vpop.permute.xlu0 %237
    %241 = vset.pattern.permute.xlu0 0
    %242 = vperm.xlu0 %241, %v32
    %v243 = vpop.permute.xlu0 %242
    %246 = vset.pattern.permute.xlu0 0
    %247 = vperm.xlu0 %246, %v33
    %v248 = vpop.permute.xlu0 %247
    %v254 = vunpack.c.l.b16 %v34
    %v255 = vunpack.c.l.b16 %v35
    %v256 = vunpack.c.l.b16 %v36
    %v257 = vunpack.c.l.b16 %v37
    %v258 = vpack.c.b16 %v255, %v254
    %v259 = vpack.c.b16 %v257, %v256
    %vm260 = vcmask 130048
    %v262 = vsel %vm260, %v258, 0
    %v265 = vsel %vm260, %v259, 0
    %v268 = vsel %vm260, %v214, 0
    %v271 = vsel %vm260, %v215, 0
    %v274 = vsel %vm260, %v216, 0
    %v277 = vsel %vm260, %v217, 0
    %v280 = vsel %vm260, %v218, 0
    %v283 = vsel %vm260, %v219, 0
    %v286 = vsel %vm260, %v220, 0
    %v289 = vsel %vm260, %v221, 0
    %v292 = vsel %vm260, %v222, 0
    %v295 = vsel %vm260, %v223, 0
    %v298 = vsel %vm260, %v224, 0
    %v301 = vsel %vm260, %v225, 0
    %v304 = vsel %vm260, %v226, 0
    %v307 = vsel %vm260, %v227, 0
    %v310 = vsel %vm260, %v228, 0
    %v313 = vsel %vm260, %v229, 0
    %315 = vmatprep.subr.bf16.mxu0 0
    %316 = vmatpush1.bf16.xpose.msra.mxu0 %v289
    %317 = vmatprep.subr.bf16.mxu0 0
    %318 = vmatpush1.bf16.xpose.msra.mxu0 %v286
    %319 = vmatprep.subr.bf16.mxu0 0
    %320 = vmatpush1.bf16.xpose.msra.mxu0 %v283
    %321 = vmatprep.subr.bf16.mxu0 0
    %322 = vmatpush1.bf16.xpose.msra.mxu0 %v280
    %323 = vmatprep.subr.bf16.mxu0 0
    %324 = vmatpush1.bf16.xpose.msra.mxu0 %v277
    %325 = vmatprep.subr.bf16.mxu0 0
    %326 = vmatpush1.bf16.xpose.msra.mxu0 %v274
    %327 = vmatprep.subr.bf16.mxu0 0
    %328 = vmatpush1.bf16.xpose.msra.mxu0 %v271
    %329 = vmatprep.subr.bf16.mxu0 0
    %330 = vmatpush1.bf16.xpose.msra.mxu0 %v268
    %331 = vmatprep.subr.bf16.mxu0 0
    %332 = vmatpush2.bf16.xpose.msra.mxu0 %v313
    %333 = vmatprep.subr.bf16.mxu0 0
    %334 = vmatpush2.bf16.xpose.msra.mxu0 %v310
    %335 = vmatprep.subr.bf16.mxu0 0
    %336 = vmatpush2.bf16.xpose.msra.mxu0 %v307
    %337 = vmatprep.subr.bf16.mxu0 0
    %338 = vmatpush2.bf16.xpose.msra.mxu0 %v304
    %339 = vmatprep.subr.bf16.mxu0 0
    %340 = vmatpush2.bf16.xpose.msra.mxu0 %v301
    %341 = vmatprep.subr.bf16.mxu0 0
    %342 = vmatpush2.bf16.xpose.msra.mxu0 %v298
    %343 = vmatprep.subr.bf16.mxu0 0
    %344 = vmatpush2.bf16.xpose.msra.mxu0 %v295
    %345 = vmatprep.subr.bf16.mxu0 0
    %346 = vmatpush2.bf16.xpose.msra.mxu0 %v292
    %347 = vmatprep.mubr.bf16.mxu0 0
    %348 = vmatmul.mubr.bf16.gmra.mxu0 %v262
    %v349 = vpop.f32.mrf.mxu0
    %v350 = vadd.f32 %v233, %v349
    %v351 = vpop.f32.mrf.mxu0
    %v352 = vadd.f32 %v233, %v351
    %v353 = vpop.f32.mrf.mxu0
    %v354 = vadd.f32 %v238, %v353
    %v355 = vpop.f32.mrf.mxu0
    %v356 = vadd.f32 %v238, %v355
    %357 = vmatprep.mubr.bf16.mxu0 0
    %358 = vmatmul.mubr.bf16.gmra.mxu0 %v265
    %v359 = vpop.f32.mrf.mxu0
    %v360 = vadd.f32 %v243, %v359
    %v361 = vpop.f32.mrf.mxu0
    %v362 = vadd.f32 %v243, %v361
    %v363 = vpop.f32.mrf.mxu0
    %v364 = vadd.f32 %v248, %v363
    %v365 = vpop.f32.mrf.mxu0
    %v366 = vadd.f32 %v248, %v365
    %367 = vdwg.mxu0
    %v368 = vmax.f32 %v350, 0.0
    %v369 = vmax.f32 %v352, 0.0
    %v370 = vmax.f32 %v354, 0.0
    %v371 = vmax.f32 %v356, 0.0
    %v372 = vmax.f32 %v360, 0.0
    %v373 = vmax.f32 %v362, 0.0
    %v374 = vmax.f32 %v364, 0.0
    %v375 = vmax.f32 %v366, 0.0
    %v376 = vpack.c.bf16 %v370, %v368
    %v377 = vpack.c.bf16 %v371, %v369
    %v378 = vpack.c.bf16 %v374, %v372
    %v379 = vpack.c.bf16 %v375, %v373
    %v384 = vunpack.c.l.b16 %v376
    %v385 = vunpack.c.l.b16 %v377
    %v386 = vunpack.c.h.b16 %v376
    %v387 = vunpack.c.h.b16 %v377
    %v388 = vunpack.c.l.b16 %v378
    %v389 = vunpack.c.l.b16 %v379
    %v390 = vunpack.c.h.b16 %v378
    %v391 = vunpack.c.h.b16 %v379
    %v392 = vpack.c.b16 %v385, %v384
    %v393 = vpack.c.b16 %v387, %v386
    %v394 = vpack.c.b16 %v389, %v388
    %v395 = vpack.c.b16 %v391, %v390
    %400 = vst [vmem:[#allocation2] sm:$0xff] %v392
    %401 = vst [vmem:[#allocation2 + $0x8] sm:$0xff] %v393
    %402 = vst [vmem:[#allocation2 + $0x10] sm:$0xff] %v394
    %403 = vst [vmem:[#allocation2 + $0x18] sm:$0xff] %v395
    %v404 = vld [vmem:[#allocation2] sm:$0xff]
    %v405 = vld [vmem:[#allocation2 + $0x8] sm:$0xff]
    %v406 = vld [vmem:[#allocation2 + $0x10] sm:$0xff]
    %v407 = vld [vmem:[#allocation2 + $0x18] sm:$0xff]
    %v408 = vld [vmem:[#allocation2 + $0x20] sm:$0xff]
    %v409 = vld [vmem:[#allocation2 + $0x28] sm:$0xff]
    %v416 = vunpack.c.l.b16 %v38
    %v417 = vunpack.c.l.b16 %v39
    %v418 = vunpack.c.l.b16 %v40
    %v419 = vunpack.c.l.b16 %v41
    %v420 = vunpack.c.l.b16 %v42
    %v421 = vunpack.c.l.b16 %v43
    %v422 = vpack.c.b16 %v417, %v416
    %v423 = vpack.c.b16 %v419, %v418
    %v424 = vpack.c.b16 %v421, %v420
    %v431 = vunpack.c.l.b16 %v404
    %v432 = vunpack.c.h.b16 %v404
    %v433 = vunpack.c.l.b16 %v405
    %v434 = vunpack.c.h.b16 %v405
    %v435 = vunpack.c.l.b16 %v406
    %v436 = vunpack.c.h.b16 %v406
    %v437 = vunpack.c.l.b16 %v407
    %v438 = vunpack.c.h.b16 %v407
    %v439 = vunpack.c.l.b16 %v408
    %v440 = vunpack.c.h.b16 %v408
    %v441 = vunpack.c.l.b16 %v409
    %v442 = vunpack.c.h.b16 %v409
    %v443 = vpack.c.b16 %v433, %v431
    %v444 = vpack.c.b16 %v434, %v432
    %v445 = vpack.c.b16 %v437, %v435
    %v446 = vpack.c.b16 %v438, %v436
    %v447 = vpack.c.b16 %v441, %v439
    %v448 = vpack.c.b16 %v442, %v440
    %vm455 = vcmask 392192
    %v457 = vsel %vm455, %v422, 0
    %v460 = vsel %vm455, %v423, 0
    %v463 = vsel %vm455, %v424, 0
    %465 = vmatprep.subr.bf16.mxu0 0
    %466 = vmatpush1.bf16.msra.mxu0 0
    %467 = vmatprep.subr.bf16.mxu0 0
    %468 = vmatpush1.bf16.msra.mxu0 0
    %469 = vmatprep.subr.bf16.mxu0 0
    %470 = vmatpush1.bf16.msra.mxu0 0
    %471 = vmatprep.subr.bf16.mxu0 0
    %472 = vmatpush1.bf16.msra.mxu0 0
    %473 = vmatprep.subr.bf16.mxu0 0
    %474 = vmatpush1.bf16.msra.mxu0 0
    %475 = vmatprep.subr.bf16.mxu0 %v448
    %476 = vmatpush1.bf16.msra.mxu0 %v447
    %477 = vmatprep.subr.bf16.mxu0 %v446
    %478 = vmatpush1.bf16.msra.mxu0 %v445
    %479 = vmatprep.subr.bf16.mxu0 %v444
    %480 = vmatpush1.bf16.msra.mxu0 %v443
    %481 = vmatprep.subr.bf16.mxu0 0
    %482 = vmatpush2.bf16.msra.mxu0 0
    %483 = vmatprep.subr.bf16.mxu0 0
    %484 = vmatpush2.bf16.msra.mxu0 0
    %485 = vmatprep.subr.bf16.mxu0 0
    %486 = vmatpush2.bf16.msra.mxu0 0
    %487 = vmatprep.subr.bf16.mxu0 0
    %488 = vmatpush2.bf16.msra.mxu0 0
    %489 = vmatprep.subr.bf16.mxu0 0
    %490 = vmatpush2.bf16.msra.mxu0 0
    %491 = vmatprep.subr.bf16.mxu0 0
    %492 = vmatpush2.bf16.msra.mxu0 0
    %493 = vmatprep.subr.bf16.mxu0 0
    %494 = vmatpush2.bf16.msra.mxu0 0
    %495 = vmatprep.subr.bf16.mxu0 0
    %496 = vmatpush2.bf16.msra.mxu0 0
    %497 = vmatprep.mubr.bf16.mxu0 0
    %498 = vmatmul.mubr.bf16.gmra.mxu0 %v457
    %v499 = vpop.f32.mrf.mxu0
    %v500 = vadd.f32 0.0, %v499
    %v501 = vpop.f32.mrf.mxu0
    %v502 = vadd.f32 0.0, %v501
    %v503 = vpop.f32.mrf.mxu0
    %v504 = vadd.f32 0.0, %v503
    %v505 = vpop.f32.mrf.mxu0
    %v506 = vadd.f32 0.0, %v505
    %507 = vmatprep.mubr.bf16.mxu0 0
    %508 = vmatmul.mubr.bf16.gmra.mxu0 %v460
    %v509 = vpop.f32.mrf.mxu0
    %v510 = vadd.f32 0.0, %v509
    %v511 = vpop.f32.mrf.mxu0
    %v512 = vadd.f32 0.0, %v511
    %v513 = vpop.f32.mrf.mxu0
    %v514 = vadd.f32 0.0, %v513
    %v515 = vpop.f32.mrf.mxu0
    %v516 = vadd.f32 0.0, %v515
    %517 = vmatprep.mubr.bf16.mxu0 0
    %518 = vmatmul.mubr.bf16.gmra.mxu0 %v463
    %v519 = vpop.f32.mrf.mxu0
    %v520 = vadd.f32 0.0, %v519
    %v521 = vpop.f32.mrf.mxu0
    %v522 = vadd.f32 0.0, %v521
    %v523 = vpop.f32.mrf.mxu0
    %v524 = vadd.f32 0.0, %v523
    %v525 = vpop.f32.mrf.mxu0
    %v526 = vadd.f32 0.0, %v525
    %527 = vdwg.mxu0
    %v528 = vmax.f32 %v500, 0.0
    %v529 = vmax.f32 %v502, 0.0
    %v530 = vmax.f32 %v504, 0.0
    %v531 = vmax.f32 %v506, 0.0
    %v532 = vmax.f32 %v510, 0.0
    %v533 = vmax.f32 %v512, 0.0
    %v534 = vmax.f32 %v514, 0.0
    %v535 = vmax.f32 %v516, 0.0
    %v536 = vmax.f32 %v520, 0.0
    %v537 = vmax.f32 %v522, 0.0
    %v538 = vmax.f32 %v524, 0.0
    %v539 = vmax.f32 %v526, 0.0
    %v540 = vpack.c.bf16 %v530, %v528
    %v541 = vpack.c.bf16 %v531, %v529
    %v542 = vpack.c.bf16 %v534, %v532
    %v543 = vpack.c.bf16 %v535, %v533
    %v544 = vpack.c.bf16 %v538, %v536
    %v545 = vpack.c.bf16 %v539, %v537
    %v552 = vunpack.c.l.b16 %v540
    %v553 = vunpack.c.l.b16 %v541
    %v554 = vunpack.c.h.b16 %v540
    %v555 = vunpack.c.h.b16 %v541
    %v556 = vunpack.c.l.b16 %v542
    %v557 = vunpack.c.l.b16 %v543
    %v558 = vunpack.c.h.b16 %v542
    %v559 = vunpack.c.h.b16 %v543
    %v560 = vunpack.c.l.b16 %v544
    %v561 = vunpack.c.l.b16 %v545
    %v562 = vunpack.c.h.b16 %v544
    %v563 = vunpack.c.h.b16 %v545
    %v564 = vpack.c.b16 %v553, %v552
    %v565 = vpack.c.b16 %v555, %v554
    %v566 = vpack.c.b16 %v557, %v556
    %v567 = vpack.c.b16 %v559, %v558
    %v568 = vpack.c.b16 %v561, %v560
    %v569 = vpack.c.b16 %v563, %v562
    %576 = vst [vmem:[#allocation3] sm:$0xff] %v564
    %577 = vst [vmem:[#allocation3 + $0x8] sm:$0xff] %v565
    %578 = vst [vmem:[#allocation3 + $0x10] sm:$0xff] %v566
    %579 = vst [vmem:[#allocation3 + $0x18] sm:$0xff] %v567
    %580 = vst [vmem:[#allocation3 + $0x20] sm:$0xff] %v568
    %581 = vst [vmem:[#allocation3 + $0x28] sm:$0xff] %v569
    %v582 = vld [vmem:[#allocation3] sm:$0xff]
    %v583 = vld [vmem:[#allocation3 + $0x8] sm:$0xff]
    %v584 = vld [vmem:[#allocation3 + $0x10] sm:$0xff]
    %v585 = vld [vmem:[#allocation3 + $0x18] sm:$0xff]
    %v586 = vld [vmem:[#allocation3 + $0x20] sm:$0xff]
    %v587 = vld [vmem:[#allocation3 + $0x28] sm:$0xff]
    %v588 = vld [vmem:[#allocation3 + $0x30] sm:$0xff]
    %v589 = vld [vmem:[#allocation3 + $0x38] sm:$0xff]
    %v592 = vunpack.c.l.b16 %v44
    %v593 = vunpack.c.l.b16 %v45
    %v594 = vpack.c.b16 %v593, %v592
    %v603 = vunpack.c.l.b16 %v582
    %v604 = vunpack.c.h.b16 %v582
    %v605 = vunpack.c.l.b16 %v583
    %v606 = vunpack.c.h.b16 %v583
    %v607 = vunpack.c.l.b16 %v584
    %v608 = vunpack.c.h.b16 %v584
    %v609 = vunpack.c.l.b16 %v585
    %v610 = vunpack.c.h.b16 %v585
    %v611 = vunpack.c.l.b16 %v586
    %v612 = vunpack.c.h.b16 %v586
    %v613 = vunpack.c.l.b16 %v587
    %v614 = vunpack.c.h.b16 %v587
    %v615 = vunpack.c.l.b16 %v588
    %v616 = vunpack.c.h.b16 %v588
    %v617 = vunpack.c.l.b16 %v589
    %v618 = vunpack.c.h.b16 %v589
    %v619 = vpack.c.b16 %v605, %v603
    %v620 = vpack.c.b16 %v606, %v604
    %v621 = vpack.c.b16 %v609, %v607
    %v622 = vpack.c.b16 %v610, %v608
    %v623 = vpack.c.b16 %v613, %v611
    %v624 = vpack.c.b16 %v614, %v612
    %v625 = vpack.c.b16 %v617, %v615
    %v626 = vpack.c.b16 %v618, %v616
    %vm635 = vcmask 523264
    %v637 = vsel %vm635, %v594, 0
    %639 = vmatprep.subr.bf16.mxu0 0
    %640 = vmatpush1.bf16.msra.mxu0 0
    %641 = vmatprep.subr.bf16.mxu0 0
    %642 = vmatpush1.bf16.msra.mxu0 0
    %643 = vmatprep.subr.bf16.mxu0 0
    %644 = vmatpush1.bf16.msra.mxu0 0
    %645 = vmatprep.subr.bf16.mxu0 0
    %646 = vmatpush1.bf16.msra.mxu0 0
    %647 = vmatprep.subr.bf16.mxu0 %v626
    %648 = vmatpush1.bf16.msra.mxu0 %v625
    %649 = vmatprep.subr.bf16.mxu0 %v624
    %650 = vmatpush1.bf16.msra.mxu0 %v623
    %651 = vmatprep.subr.bf16.mxu0 %v622
    %652 = vmatpush1.bf16.msra.mxu0 %v621
    %653 = vmatprep.subr.bf16.mxu0 %v620
    %654 = vmatpush1.bf16.msra.mxu0 %v619
    %655 = vmatprep.subr.bf16.mxu0 0
    %656 = vmatpush2.bf16.msra.mxu0 0
    %657 = vmatprep.subr.bf16.mxu0 0
    %658 = vmatpush2.bf16.msra.mxu0 0
    %659 = vmatprep.subr.bf16.mxu0 0
    %660 = vmatpush2.bf16.msra.mxu0 0
    %661 = vmatprep.subr.bf16.mxu0 0
    %662 = vmatpush2.bf16.msra.mxu0 0
    %663 = vmatprep.subr.bf16.mxu0 0
    %664 = vmatpush2.bf16.msra.mxu0 0
    %665 = vmatprep.subr.bf16.mxu0 0
    %666 = vmatpush2.bf16.msra.mxu0 0
    %667 = vmatprep.subr.bf16.mxu0 0
    %668 = vmatpush2.bf16.msra.mxu0 0
    %669 = vmatprep.subr.bf16.mxu0 0
    %670 = vmatpush2.bf16.msra.mxu0 0
    %671 = vmatprep.mubr.bf16.mxu0 0
    %672 = vmatmul.mubr.bf16.gmra.mxu0 %v637
    %v673 = vpop.f32.mrf.mxu0
    %v674 = vadd.f32 0.0, %v673
    %v675 = vpop.f32.mrf.mxu0
    %v676 = vadd.f32 0.0, %v675
    %v677 = vpop.f32.mrf.mxu0
    %v678 = vadd.f32 0.0, %v677
    %v679 = vpop.f32.mrf.mxu0
    %v680 = vadd.f32 0.0, %v679
    %681 = vdwg.mxu0
    %v682 = vmax.f32 %v674, 0.0
    %v683 = vmax.f32 %v676, 0.0
    %v684 = vmax.f32 %v678, 0.0
    %v685 = vmax.f32 %v680, 0.0
    %v686 = vpack.c.bf16 %v684, %v682
    %v687 = vpack.c.bf16 %v685, %v683
    %v690 = vunpack.c.l.b16 %v686
    %v691 = vunpack.c.l.b16 %v687
    %v692 = vunpack.c.h.b16 %v686
    %v693 = vunpack.c.h.b16 %v687
    %v694 = vpack.c.b16 %v691, %v690
    %v695 = vpack.c.b16 %v693, %v692
    %698 = vst [vmem:[#allocation4] sm:$0xff] %v694
    %699 = vst [vmem:[#allocation4 + $0x8] sm:$0xff] %v695
    %v700 = vld [vmem:[#allocation4] sm:$0xff]
    %v701 = vld [vmem:[#allocation4 + $0x8] sm:$0xff]
    %v702 = vld [vmem:[#allocation4 + $0x10] sm:$0xff]
    %v703 = vld [vmem:[#allocation4 + $0x18] sm:$0xff]
    %v708 = vunpack.c.l.b16 %v700
    %v709 = vunpack.c.h.b16 %v700
    %v710 = vunpack.c.l.b16 %v701
    %v711 = vunpack.c.h.b16 %v701
    %v712 = vunpack.c.l.b16 %v702
    %v713 = vunpack.c.h.b16 %v702
    %v714 = vunpack.c.l.b16 %v703
    %v715 = vunpack.c.h.b16 %v703
    %v716 = vpack.c.b16 %v710, %v708
    %v717 = vpack.c.b16 %v711, %v709
    %v718 = vpack.c.b16 %v714, %v712
    %v719 = vpack.c.b16 %v715, %v713
    %vm724 = vcmask 261120
    %v726 = vsel %vm724, %v46, 0
    %728 = vmatprep.subr.bf16.mxu0 0
    %729 = vmatpush1.bf16.msra.mxu0 0
    %730 = vmatprep.subr.bf16.mxu0 0
    %731 = vmatpush1.bf16.msra.mxu0 0
    %732 = vmatprep.subr.bf16.mxu0 0
    %733 = vmatpush1.bf16.msra.mxu0 0
    %734 = vmatprep.subr.bf16.mxu0 0
    %735 = vmatpush1.bf16.msra.mxu0 0
    %736 = vmatprep.subr.bf16.mxu0 0
    %737 = vmatpush1.bf16.msra.mxu0 0
    %738 = vmatprep.subr.bf16.mxu0 0
    %739 = vmatpush1.bf16.msra.mxu0 0
    %740 = vmatprep.subr.bf16.mxu0 %v719
    %741 = vmatpush1.bf16.msra.mxu0 %v718
    %742 = vmatprep.subr.bf16.mxu0 %v717
    %743 = vmatpush1.bf16.msra.mxu0 %v716
    %744 = vmatprep.subr.bf16.mxu0 0
    %745 = vmatpush2.bf16.msra.mxu0 0
    %746 = vmatprep.subr.bf16.mxu0 0
    %747 = vmatpush2.bf16.msra.mxu0 0
    %748 = vmatprep.subr.bf16.mxu0 0
    %749 = vmatpush2.bf16.msra.mxu0 0
    %750 = vmatprep.subr.bf16.mxu0 0
    %751 = vmatpush2.bf16.msra.mxu0 0
    %752 = vmatprep.subr.bf16.mxu0 0
    %753 = vmatpush2.bf16.msra.mxu0 0
    %754 = vmatprep.subr.bf16.mxu0 0
    %755 = vmatpush2.bf16.msra.mxu0 0
    %756 = vmatprep.subr.bf16.mxu0 0
    %757 = vmatpush2.bf16.msra.mxu0 0
    %758 = vmatprep.subr.bf16.mxu0 0
    %759 = vmatpush2.bf16.msra.mxu0 0
    %760 = vmatprep.mubr.bf16.mxu0 0
    %761 = vmatmul.mubr.bf16.gmra.mxu0 %v726
    %v762 = vpop.f32.mrf.mxu0
    %v763 = vadd.f32 0.0, %v762
    %v764 = vpop.f32.mrf.mxu0
    %v765 = vadd.f32 0.0, %v764
    %v766 = vpop.f32.mrf.mxu0
    %v767 = vpop.f32.mrf.mxu0
    %768 = vdwg.mxu0
    %v769 = vmax.f32 %v763, 0.0
    %v770 = vmax.f32 %v765, 0.0
    %v771 = vpack.c.bf16 %v769, %v769
    %v772 = vpack.c.bf16 %v770, %v770
    %v775 = vunpack.c.l.b16 %v771
    %v776 = vunpack.c.l.b16 %v772
    %v777 = vpack.c.b16 %v776, %v775
    %vm779 = vcmask 1042432
    %vm780 = vsmask.f32 2304
    %vm781 = vmand %vm779, %vm780
    %vm782 = vcmask 1046532
    %vm783 = vsmask.f32 6400
    %vm784 = vmand %vm782, %vm783
    %vm785 = vmor %vm784, %vm781
    %v786 = vld [vmem:[#allocation5] sm:$0x77]
    %v787 = vsel %vm785, %v777, %v786
    %788 = vst [vmem:[#allocation5] sm:$0x77] %v787
    // Predicated region
    $region30: #{tpu_custom_call.1} parent=1 // pred_check
      _
    $region31: #{tpu_custom_call.1} parent=1 // pred_check_branch
      %790 = sbr.rel (0) target = $region33
    $region32: #{tpu_custom_call.1} parent=1 // pred_region
      %s792 = ssub.s32 128, 128
      %793 = vsyncadd [#allocation6], %s792
      %s795 = sshll.u32 [#allocation5], 4
      %s796 = int_to_ptr.vmem [resolvable:$true] %s795
      %798 = dma.vmem_to_hbm [thread:$0]  %s796, 128, %s7, [#allocation6]
    $region33: #{tpu_custom_call.1} parent=1 // pred_fallthru
      _
    // Predicated region
    $region34: #{tpu_custom_call.1} parent=1 // pred_check
      _
    $region35: #{tpu_custom_call.1} parent=1 // pred_check_branch
      %800 = sbr.rel (0) target = $region37
    $region36: #{tpu_custom_call.1} parent=1 // pred_region
      %801 = dma.done [#allocation6], 128
    $region37: #{tpu_custom_call.1} parent=1 // pred_fallthru
      _
    %802 = vsyncpa [#allocation6], 1

</llo_original>
